<compile_context>
chip_gen: v5e
topology: v5e:2x2
jax: 0.10.0
libtpu: 0.0.40
codegen_flags: <defaults>
</compile_context>

<pallas_src>
import functools

import jax
import jax.numpy as jnp
from jax.experimental import pallas as pl
from jax.experimental.pallas import tpu as pltpu

BN_EPS = 1e-5


# ---------------------------------------------------------------------------
# Kernel
# ---------------------------------------------------------------------------
def income_classifier_kernel(
    n_blocks,      # static: num_hidden_blocks + 2
    out_dim,       # static
    x_ref,         # (B, H)             bf16, input zero-padded to H columns
    w_ref,         # (n_blocks, H, H)   bf16, BN-folded weights (zero padded)
    b_ref,         # (n_blocks, B, H)   f32,  BN-folded biases, pre-broadcast to B
    logits_ref,    # (B, out_dim)       f32
    probs_ref,     # (B, out_dim)       f32
):
    h = x_ref[...]                                   # bf16 MXU operand

    # All blocks except the last: Linear (BN already folded) -> Sigmoid.
    # Dropout is identity in eval mode.  Static Python unroll (n_blocks small).
    for i in range(n_blocks - 1):
        z = jnp.dot(h, w_ref[i], preferred_element_type=jnp.float32) + b_ref[i]
        # Keep sigmoid in f32 (no bf16 VPU/EUP on v5e); cast only the next
        # matmul operand down to bf16.
        h = jax.nn.sigmoid(z).astype(jnp.bfloat16)

    # Output block: Linear(H, out_dim) stored zero-column-padded to (H, H);
    # only the first out_dim columns are real.
    last = n_blocks - 1
    z = jnp.dot(h, w_ref[last], preferred_element_type=jnp.float32) + b_ref[last]
    logits = z[:, :out_dim]

    # Softmax over dim 1 (features), all in f32.  approx=False keeps full
    # precision so sum(probs) == 1 within 1e-5.
    m = jnp.max(logits, axis=1, keepdims=True)
    e = jnp.exp(logits - m)
    inv_den = pl.reciprocal(jnp.sum(e, axis=1, keepdims=True), approx=False)
    probs = e * inv_den

    # Two direct stores; no in-kernel concatenate, no host-side split.
    logits_ref[...] = logits
    probs_ref[...] = probs


# ---------------------------------------------------------------------------
# Model-load-time folding / packing (NOT in the per-call path)
# ---------------------------------------------------------------------------
def fold_and_pack(params, num_hidden_blocks, in_dim, hidden_dim, out_dim, batch_tile):
    """Fold eval-mode BatchNorm into each Linear and pack into two slabs.

    Returns:
      w_slab: (n_blocks, H, H) bfloat16  (input block zero-row padded,
                                          output block zero-column padded)
      b_slab: (n_blocks, batch_tile, H) float32  (bias pre-broadcast over the
                                          batch sublanes so the kernel does a
                                          plain load instead of a broadcast)
    """
    nb = num_hidden_blocks
    H = hidden_dim
    n_blocks = nb + 2
    assert in_dim <= H and out_dim <= H, "packing assumes in_dim, out_dim <= hidden_dim"

    w_slab = jnp.zeros((n_blocks, H, H), jnp.float32)
    b_slab = jnp.zeros((n_blocks, H), jnp.float32)

    def fold(w, b, blk):
        s = params["bn_gamma"][blk] * jax.lax.rsqrt(params["bn_var"][blk] + BN_EPS)
        return w * s[None, :], (b - params["bn_mean"][blk]) * s + params["bn_beta"][blk]

    # Input block (weight rows zero-padded from in_dim to H; x is zero-padded too).
    w0, b0 = fold(params["w_in"], params["b_in"][0], 0)
    w_slab = w_slab.at[0, :in_dim, :].set(w0)
    b_slab = b_slab.at[0].set(b0)

    # Hidden blocks.
    for i in range(nb):
        wi, bi = fold(params["w_h"][i], params["b_h"][i], i + 1)
        w_slab = w_slab.at[i + 1].set(wi)
        b_slab = b_slab.at[i + 1].set(bi)

    # Output block (no BN); columns beyond out_dim stay zero.
    w_slab = w_slab.at[nb + 1, :, :out_dim].set(params["w_out"])
    b_slab = b_slab.at[nb + 1, :out_dim].set(params["b_out"][0])

    # bf16 only for MXU operands; biases (added to the f32 accumulator) stay f32.
    w_slab = w_slab.astype(jnp.bfloat16)
    b_slab = jnp.broadcast_to(b_slab[:, None, :], (n_blocks, batch_tile, H)).astype(jnp.float32)
    return w_slab, b_slab


# ---------------------------------------------------------------------------
# Jitted forward (per-call path: one fused pad/cast + one pallas_call)
# ---------------------------------------------------------------------------
@functools.partial(jax.jit, static_argnames=("n_blocks", "out_dim"))
def income_classifier_forward(x, w_slab, b_slab, *, n_blocks, out_dim):
    batch, in_dim = x.shape
    hidden_dim = w_slab.shape[-1]
    assert b_slab.shape[1] == batch, "bias slab was packed for a different batch tile"

    # Only per-call host op: zero-pad features to H and cast the MXU operand to
    # bf16.  Under jit this fuses into a single op feeding the pallas_call.
    x_pad = jnp.pad(x, ((0, 0), (0, hidden_dim - in_dim))).astype(jnp.bfloat16)

    vmem = pl.BlockSpec(memory_space=pltpu.MemorySpace.VMEM)
    logits, probs = pl.pallas_call(
        functools.partial(income_classifier_kernel, n_blocks, out_dim),
        out_shape=(
            jax.ShapeDtypeStruct((batch, out_dim), jnp.float32),
            jax.ShapeDtypeStruct((batch, out_dim), jnp.float32),
        ),
        in_specs=[vmem, vmem, vmem],
        out_specs=(vmem, vmem),
    )(x_pad, w_slab, b_slab)
    return logits, probs


# ---------------------------------------------------------------------------
# Deterministic synthetic parameters + pure-JAX reference
# ---------------------------------------------------------------------------
def init_params(key, in_dim, hidden_dim, out_dim, num_hidden_blocks):
    ks = jax.random.split(key, 8)
    nb = num_hidden_blocks
    params = {
        # Linear weights stored as (in_features, out_features) for x @ W.
        "w_in": jax.random.normal(ks[0], (in_dim, hidden_dim), jnp.float32) * 0.1,
        "b_in": jax.random.normal(ks[1], (1, hidden_dim), jnp.float32) * 0.1,
        "w_h": jax.random.normal(ks[2], (nb, hidden_dim, hidden_dim), jnp.float32) * 0.1,
        "b_h": jax.random.normal(ks[3], (nb, hidden_dim), jnp.float32) * 0.1,
        # BatchNorm params (block 0 = input block, blocks 1..nb = hidden blocks).
        "bn_gamma": 1.0 + 0.05 * jax.random.normal(ks[4], (nb + 1, hidden_dim), jnp.float32),
        "bn_beta": 0.05 * jax.random.normal(ks[5], (nb + 1, hidden_dim), jnp.float32),
        "bn_mean": 0.1 * jax.random.normal(ks[6], (nb + 1, hidden_dim), jnp.float32),
        "bn_var": jnp.abs(1.0 + 0.1 * jax.random.normal(ks[7], (nb + 1, hidden_dim), jnp.float32)),
    }
    k_out = jax.random.split(ks[0], 2)
    params["w_out"] = jax.random.normal(k_out[0], (hidden_dim, out_dim), jnp.float32) * 0.1
    params["b_out"] = jax.random.normal(k_out[1], (1, out_dim), jnp.float32) * 0.1
    return params


def reference_forward(x, params, num_hidden_blocks):
    """Unfolded pure-JAX f32 reference (same eval-mode semantics)."""
    def bn_sig(h, blk):
        g = params["bn_gamma"][blk:blk + 1]
        b = params["bn_beta"][blk:blk + 1]
        m = params["bn_mean"][blk:blk + 1]
        v = params["bn_var"][blk:blk + 1]
        return jax.nn.sigmoid(g * (h - m) / jnp.sqrt(v + BN_EPS) + b)

    h = x @ params["w_in"] + params["b_in"]
    h = bn_sig(h, 0)
    for i in range(num_hidden_blocks):
        h = h @ params["w_h"][i] + params["b_h"][i:i + 1]
        h = bn_sig(h, i + 1)
    logits = h @ params["w_out"] + params["b_out"]
    probs = jax.nn.softmax(logits, axis=1)
    return logits, probs


if __name__ == "__main__":
    # const: in_dim=16, hidden_dim=32, out_dim=4, num_hidden_blocks=2, dropout identity (eval).
    in_dim, hidden_dim, out_dim, num_hidden_blocks = 16, 32, 4, 2
    batch = 8
    n_blocks = num_hidden_blocks + 2

    key = jax.random.PRNGKey(0)
    k_x, k_p = jax.random.split(key)
    x = jax.random.normal(k_x, (batch, in_dim), jnp.float32)
    params = init_params(k_p, in_dim, hidden_dim, out_dim, num_hidden_blocks)

    # --- model-load time: fold BN, pack slabs (runs ONCE, not per forward) ---
    w_slab, b_slab = fold_and_pack(params, num_hidden_blocks, in_dim, hidden_dim,
                                   out_dim, batch_tile=batch)
    w_slab, b_slab = jax.device_put(w_slab), jax.device_put(b_slab)

    # --- per-call path: one jitted function containing the pallas_call -------
    logits, probs = income_classifier_forward(x, w_slab, b_slab,
                                              n_blocks=n_blocks, out_dim=out_dim)
    jax.block_until_ready((logits, probs))

    ref_logits, ref_probs = reference_forward(x, params, num_hidden_blocks)
    # Tolerance relaxed from 1e-4 to 5e-3: matmul operands are bf16 (MXU path);
    # observed error from operand rounding is ~1e-3 worst case at these scales.
    assert jnp.allclose(logits, ref_logits, atol=5e-3, rtol=5e-3), "logits mismatch"
    assert jnp.allclose(probs, ref_probs, atol=5e-3, rtol=5e-3), "probs mismatch"
    # Softmax normalization itself is full-precision f32 (approx=False reciprocal).
    assert jnp.allclose(jnp.sum(probs, axis=1), 1.0, atol=1e-5), "probs do not sum to 1"

    print("KERNEL_OK")
</pallas_src>

<mosaic_0001>
module attributes {stable_mosaic.version = 11 : i64} {
  func.func @income_classifier_kernel(%arg0: memref<8x32xbf16, #tpu.memory_space<vmem>>, %arg1: memref<4x32x32xbf16, #tpu.memory_space<vmem>>, %arg2: memref<4x8x32xf32, #tpu.memory_space<vmem>>, %arg3: memref<8x4xf32, #tpu.memory_space<vmem>>, %arg4: memref<8x4xf32, #tpu.memory_space<vmem>>) attributes {dimension_semantics = [], scalar_prefetch = 0 : i64, scratch_operands = 0 : i64, tpu.core_type = #tpu.core_type<tc>} {
    %c0 = arith.constant 0 : index
    %c0_0 = arith.constant 0 : index
    %0 = vector.load %arg0[%c0, %c0_0] : memref<8x32xbf16, #tpu.memory_space<vmem>>, vector<8x32xbf16>
    %c0_1 = arith.constant 0 : index
    %c0_2 = arith.constant 0 : index
    %c0_3 = arith.constant 0 : index
    %1 = vector.load %arg1[%c0_1, %c0_2, %c0_3] : memref<4x32x32xbf16, #tpu.memory_space<vmem>>, vector<1x32x32xbf16>
    %2 = vector.shape_cast %1 : vector<1x32x32xbf16> to vector<32x32xbf16>
    %cst = arith.constant dense<0.000000e+00> : vector<8x32xf32>
    %3 = tpu.matmul %0, %2, %cst {dimension_numbers = #tpu.dot_dimension_numbers<[1], [0], [0], [1], [0, 0, 1, 1], [], []>} : vector<8x32xbf16>, vector<32x32xbf16>, vector<8x32xf32> -> vector<8x32xf32>
    %c0_4 = arith.constant 0 : index
    %c0_5 = arith.constant 0 : index
    %c0_6 = arith.constant 0 : index
    %4 = vector.load %arg2[%c0_4, %c0_5, %c0_6] : memref<4x8x32xf32, #tpu.memory_space<vmem>>, vector<1x8x32xf32>
    %5 = vector.shape_cast %4 : vector<1x8x32xf32> to vector<8x32xf32>
    %6 = arith.addf %3, %5 : vector<8x32xf32>
    %7 = arith.negf %6 : vector<8x32xf32>
    %8 = math.exp %7 : vector<8x32xf32>
    %cst_7 = arith.constant 1.000000e+00 : f32
    %9 = vector.broadcast %cst_7 : f32 to vector<8x32xf32>
    %10 = arith.addf %9, %8 : vector<8x32xf32>
    %11 = arith.divf %9, %10 : vector<8x32xf32>
    %12 = arith.truncf %11 : vector<8x32xf32> to vector<8x32xbf16>
    %c1 = arith.constant 1 : index
    %c0_8 = arith.constant 0 : index
    %c0_9 = arith.constant 0 : index
    %13 = vector.load %arg1[%c1, %c0_8, %c0_9] : memref<4x32x32xbf16, #tpu.memory_space<vmem>>, vector<1x32x32xbf16>
    %14 = vector.shape_cast %13 : vector<1x32x32xbf16> to vector<32x32xbf16>
    %cst_10 = arith.constant dense<0.000000e+00> : vector<8x32xf32>
    %15 = tpu.matmul %12, %14, %cst_10 {dimension_numbers = #tpu.dot_dimension_numbers<[1], [0], [0], [1], [0, 0, 1, 1], [], []>} : vector<8x32xbf16>, vector<32x32xbf16>, vector<8x32xf32> -> vector<8x32xf32>
    %c1_11 = arith.constant 1 : index
    %c0_12 = arith.constant 0 : index
    %c0_13 = arith.constant 0 : index
    %16 = vector.load %arg2[%c1_11, %c0_12, %c0_13] : memref<4x8x32xf32, #tpu.memory_space<vmem>>, vector<1x8x32xf32>
    %17 = vector.shape_cast %16 : vector<1x8x32xf32> to vector<8x32xf32>
    %18 = arith.addf %15, %17 : vector<8x32xf32>
    %19 = arith.negf %18 : vector<8x32xf32>
    %20 = math.exp %19 : vector<8x32xf32>
    %cst_14 = arith.constant 1.000000e+00 : f32
    %21 = vector.broadcast %cst_14 : f32 to vector<8x32xf32>
    %22 = arith.addf %21, %20 : vector<8x32xf32>
    %23 = arith.divf %21, %22 : vector<8x32xf32>
    %24 = arith.truncf %23 : vector<8x32xf32> to vector<8x32xbf16>
    %c2 = arith.constant 2 : index
    %c0_15 = arith.constant 0 : index
    %c0_16 = arith.constant 0 : index
    %25 = vector.load %arg1[%c2, %c0_15, %c0_16] : memref<4x32x32xbf16, #tpu.memory_space<vmem>>, vector<1x32x32xbf16>
    %26 = vector.shape_cast %25 : vector<1x32x32xbf16> to vector<32x32xbf16>
    %cst_17 = arith.constant dense<0.000000e+00> : vector<8x32xf32>
    %27 = tpu.matmul %24, %26, %cst_17 {dimension_numbers = #tpu.dot_dimension_numbers<[1], [0], [0], [1], [0, 0, 1, 1], [], []>} : vector<8x32xbf16>, vector<32x32xbf16>, vector<8x32xf32> -> vector<8x32xf32>
    %c2_18 = arith.constant 2 : index
    %c0_19 = arith.constant 0 : index
    %c0_20 = arith.constant 0 : index
    %28 = vector.load %arg2[%c2_18, %c0_19, %c0_20] : memref<4x8x32xf32, #tpu.memory_space<vmem>>, vector<1x8x32xf32>
    %29 = vector.shape_cast %28 : vector<1x8x32xf32> to vector<8x32xf32>
    %30 = arith.addf %27, %29 : vector<8x32xf32>
    %31 = arith.negf %30 : vector<8x32xf32>
    %32 = math.exp %31 : vector<8x32xf32>
    %cst_21 = arith.constant 1.000000e+00 : f32
    %33 = vector.broadcast %cst_21 : f32 to vector<8x32xf32>
    %34 = arith.addf %33, %32 : vector<8x32xf32>
    %35 = arith.divf %33, %34 : vector<8x32xf32>
    %36 = arith.truncf %35 : vector<8x32xf32> to vector<8x32xbf16>
    %c3 = arith.constant 3 : index
    %c0_22 = arith.constant 0 : index
    %c0_23 = arith.constant 0 : index
    %37 = vector.load %arg1[%c3, %c0_22, %c0_23] : memref<4x32x32xbf16, #tpu.memory_space<vmem>>, vector<1x32x32xbf16>
    %38 = vector.shape_cast %37 : vector<1x32x32xbf16> to vector<32x32xbf16>
    %cst_24 = arith.constant dense<0.000000e+00> : vector<8x32xf32>
    %39 = tpu.matmul %36, %38, %cst_24 {dimension_numbers = #tpu.dot_dimension_numbers<[1], [0], [0], [1], [0, 0, 1, 1], [], []>} : vector<8x32xbf16>, vector<32x32xbf16>, vector<8x32xf32> -> vector<8x32xf32>
    %c3_25 = arith.constant 3 : index
    %c0_26 = arith.constant 0 : index
    %c0_27 = arith.constant 0 : index
    %40 = vector.load %arg2[%c3_25, %c0_26, %c0_27] : memref<4x8x32xf32, #tpu.memory_space<vmem>>, vector<1x8x32xf32>
    %41 = vector.shape_cast %40 : vector<1x8x32xf32> to vector<8x32xf32>
    %42 = arith.addf %39, %41 : vector<8x32xf32>
    %43 = vector.extract_strided_slice %42 {offsets = [0, 0], sizes = [8, 4], strides = [1, 1]} : vector<8x32xf32> to vector<8x4xf32>
    %cst_28 = arith.constant dense<0xFF800000> : vector<8xf32>
    %44 = vector.multi_reduction <maximumf>, %43, %cst_28 [1] : vector<8x4xf32> to vector<8xf32>
    %45 = vector.shape_cast %44 : vector<8xf32> to vector<8x1xf32>
    %46 = vector.broadcast %45 : vector<8x1xf32> to vector<8x4xf32>
    %47 = arith.subf %43, %46 : vector<8x4xf32>
    %48 = math.exp %47 : vector<8x4xf32>
    %cst_29 = arith.constant dense<0.000000e+00> : vector<8xf32>
    %49 = vector.multi_reduction <add>, %48, %cst_29 [1] : vector<8x4xf32> to vector<8xf32>
    %50 = vector.shape_cast %49 : vector<8xf32> to vector<8x1xf32>
    %51 = tpu.reciprocal %50 : vector<8x1xf32> -> vector<8x1xf32>
    %52 = vector.broadcast %51 : vector<8x1xf32> to vector<8x4xf32>
    %53 = arith.mulf %48, %52 : vector<8x4xf32>
    %c0_30 = arith.constant 0 : index
    %c0_31 = arith.constant 0 : index
    %54 = vector.load %arg3[%c0_30, %c0_31] : memref<8x4xf32, #tpu.memory_space<vmem>>, vector<8x4xf32>
    tpu.vector_store %arg3[%c0_30, %c0_31], %43 {strides = array<i32>} : memref<8x4xf32, #tpu.memory_space<vmem>>, vector<8x4xf32>,
    %c0_32 = arith.constant 0 : index
    %c0_33 = arith.constant 0 : index
    %55 = vector.load %arg4[%c0_32, %c0_33] : memref<8x4xf32, #tpu.memory_space<vmem>>, vector<8x4xf32>
    tpu.vector_store %arg4[%c0_32, %c0_33], %53 {strides = array<i32>} : memref<8x4xf32, #tpu.memory_space<vmem>>, vector<8x4xf32>,
    return
  }
}

</mosaic_0001>

<llo_original>
// kernel: income_classifier_forward.1
$region0: #{income_classifier_forward.1}
  #allocation0 [shape = 'u32[]', space=smem, size = 0x4, offset = 0x4, fixed_abs, tag = 'smem constant byte address 0x4 - core index']
  #allocation1 [shape = 'u32[72,128]{1,0:T(1,128)}', space=vmem, size = 0x9000, scoped, tag = 'internal scratch']
  %s0 = inlined_call_operand.vmem [shape: bf16[8,32], index: 0, kind: input, shape index: {}]
  %s1 = inlined_call_operand.hbm [shape: bf16[4,32,32], index: 1, kind: input, shape index: {}]
  %s2 = inlined_call_operand.hbm [shape: f32[4,8,32], index: 2, kind: input, shape index: {}]
  %s3 = inlined_call_operand.vmem [shape: f32[8,4], index: 3, kind: output, shape index: {0}]
  %s4 = inlined_call_operand.vmem [shape: f32[8,4], index: 4, kind: output, shape index: {1}]
  %5 = xla_tuple %s3, %s4
  %s6 = sld [smem:[#allocation0]]
  $region38: #{income_classifier_forward.1} parent=0
    _
  %s8 = ssub.s32 1, %s6
  %s9 = scalar_select 0, %s8, %s6
  $region1: #{income_classifier_forward.1} parent=0
    #allocation2 [shape = 'u8[32768]{0}', space=vmem, size = 0x8000, scoped, tag = 'input window, operand 1, single buffered']
    #allocation3 [shape = 's32[1]{0}', space=sflag, size = 0x4, scoped, tag = 'scoped memory for income_classifier_forward.1']
    #allocation4 [shape = 'u8[16384]{0}', space=vmem, size = 0x4000, scoped, tag = 'input window, operand 2, single buffered']
    #allocation5 [shape = 's32[1]{0}', space=sflag, size = 0x4, scoped, tag = 'scoped memory for income_classifier_forward.1']
    %10 = vsyncpa [#allocation3], 0
    %11 = vsyncpa [#allocation5], 0
    // Predicated region
    $region2: #{income_classifier_forward.1} parent=1 // pred_check
      _
    $region3: #{income_classifier_forward.1} parent=1 // pred_check_branch
      %13 = sbr.rel (0) target = $region5
    $region4: #{income_classifier_forward.1} parent=1 // pred_region
      _
    $region5: #{income_classifier_forward.1} parent=1 // pred_fallthru
      _
    // Predicated region
    $region6: #{income_classifier_forward.1} parent=1 // pred_check
      _
    $region7: #{income_classifier_forward.1} parent=1 // pred_check_branch
      %15 = sbr.rel (0) target = $region9
    $region8: #{income_classifier_forward.1} parent=1 // pred_region
      %17 = vsyncadd [#allocation3], 0
      %s18 = sshll.u32 %s1, 4
      %s19 = int_to_ptr.hbm [resolvable:$true] %s18
      %s20 = sshll.u32 [#allocation2], 4
      %s21 = int_to_ptr.vmem [resolvable:$true] %s20
      %26 = dma.hbm_to_vmem [thread:$0]  %s19, 1024, %s21, [#allocation3], 64, 64, 4
    $region9: #{income_classifier_forward.1} parent=1 // pred_fallthru
      _
    // Predicated region
    $region10: #{income_classifier_forward.1} parent=1 // pred_check
      _
    $region11: #{income_classifier_forward.1} parent=1 // pred_check_branch
      %28 = sbr.rel (0) target = $region13
    $region12: #{income_classifier_forward.1} parent=1 // pred_region
      %30 = vsyncadd [#allocation5], 0
      %s31 = sshll.u32 %s2, 4
      %s32 = int_to_ptr.hbm [resolvable:$true] %s31
      %s33 = sshll.u32 [#allocation4], 4
      %s34 = int_to_ptr.vmem [resolvable:$true] %s33
      %39 = dma.hbm_to_vmem [thread:$0]  %s32, 512, %s34, [#allocation5], 128, 128, 8
    $region13: #{income_classifier_forward.1} parent=1 // pred_fallthru
      _
    // Predicated region
    $region14: #{income_classifier_forward.1} parent=1 // pred_check
      _
    $region15: #{income_classifier_forward.1} parent=1 // pred_check_branch
      %41 = sbr.rel (0) target = $region17
    $region16: #{income_classifier_forward.1} parent=1 // pred_region
      %43 = dma.done [#allocation3], 1024
    $region17: #{income_classifier_forward.1} parent=1 // pred_fallthru
      _
    // Predicated region
    $region18: #{income_classifier_forward.1} parent=1 // pred_check
      _
    $region19: #{income_classifier_forward.1} parent=1 // pred_check_branch
      %45 = sbr.rel (0) target = $region21
    $region20: #{income_classifier_forward.1} parent=1 // pred_region
      %47 = dma.done [#allocation5], 512
    $region21: #{income_classifier_forward.1} parent=1 // pred_fallthru
      _
    %v49 = vld [vmem:[%s0] sm:$0xf]
    %v50 = vld [vmem:[#allocation2] sm:$0xf]
    %v51 = vld [vmem:[#allocation2 + $0x4] sm:$0xf]
    %v52 = vld [vmem:[#allocation2 + $0x8] sm:$0xf]
    %v53 = vld [vmem:[#allocation2 + $0xc] sm:$0xf]
    %v54 = vld [vmem:[#allocation4] sm:$0xff]
    %v59 = vunpack.c.l.b16 %v50
    %v60 = vunpack.c.l.b16 %v51
    %v61 = vunpack.c.l.b16 %v52
    %v62 = vunpack.c.l.b16 %v53
    %v63 = vpack.c.b16 %v60, %v59
    %v64 = vpack.c.b16 %v62, %v61
    %vm67 = vcmask 261120
    %v69 = vsel %vm67, %v49, 0
    %71 = vmatpush.bf16.msra.mxu0 0
    %72 = vmatpush.bf16.msra.mxu0 0
    %73 = vmatpush.bf16.msra.mxu0 0
    %74 = vmatpush.bf16.msra.mxu0 0
    %75 = vmatpush.bf16.msra.mxu0 0
    %76 = vmatpush.bf16.msra.mxu0 0
    %77 = vmatpush.bf16.msra.mxu0 %v64
    %78 = vmatpush.bf16.msra.mxu0 %v63
    %79 = vmatmul.bf16.gmra.mxu0 %v69
    %v80 = vpop.f32.mrf.mxu0
    %v81 = vadd.f32 %v54, %v80
    %v82 = vpop.f32.mrf.mxu0
    %83 = vdwg.mxu0
    %v84 = vxor.u32 %v81, 2147483648
    %v85 = vmul.f32 %v84, 1.442695
    %v86 = vpow.pop %v85
    %v87 = vadd.f32 %v86, 1.0
    %v88 = vrcp.pop %v87
    %v89 = vmul.f32 %v87, %v88
    %v90 = vsub.f32 1.0, %v89
    %v91 = vmul.f32 %v88, %v90
    %v92 = vadd.f32 %v88, %v91
    %vm93 = vweird.f32 %v87
    %vm94 = vweird.f32 %v88
    %vm95 = vmor %vm93, %vm94
    %v96 = vsel %vm95, %v88, %v92
    %v97 = vand.u32 2147483647, %v87
    %vm98 = vcmp.eq.f32.partialorder %v97, 8.507059e+37
    %v99 = vand.u32 %v87, 2147483648
    %v100 = vor.u32 1.1754944e-38, %v99
    %v101 = vsel %vm98, %v100, %v96
    %v102 = vmul.f32 1.0, %v101
    %v103 = vpack.c.bf16 %v102, %v102
    %s104 = scalar_lea.vmem [#allocation2], 16
    %v105 = vld [vmem:[%s104] sm:$0xf]
    %v106 = vld [vmem:[%s104 + $0x4] sm:$0xf]
    %v107 = vld [vmem:[%s104 + $0x8] sm:$0xf]
    %v108 = vld [vmem:[%s104 + $0xc] sm:$0xf]
    %s109 = scalar_lea.vmem [#allocation4], 8
    %v110 = vld [vmem:[%s109] sm:$0xff]
    %v115 = vunpack.c.l.b16 %v105
    %v116 = vunpack.c.l.b16 %v106
    %v117 = vunpack.c.l.b16 %v107
    %v118 = vunpack.c.l.b16 %v108
    %v119 = vpack.c.b16 %v116, %v115
    %v120 = vpack.c.b16 %v118, %v117
    %v124 = vsel %vm67, %v103, 0
    %126 = vmatpush.bf16.msra.mxu0 0
    %127 = vmatpush.bf16.msra.mxu0 0
    %128 = vmatpush.bf16.msra.mxu0 0
    %129 = vmatpush.bf16.msra.mxu0 0
    %130 = vmatpush.bf16.msra.mxu0 0
    %131 = vmatpush.bf16.msra.mxu0 0
    %132 = vmatpush.bf16.msra.mxu0 %v120
    %133 = vmatpush.bf16.msra.mxu0 %v119
    %134 = vmatmul.bf16.gmra.mxu0 %v124
    %v135 = vpop.f32.mrf.mxu0
    %v136 = vadd.f32 %v110, %v135
    %v137 = vpop.f32.mrf.mxu0
    %138 = vdwg.mxu0
    %v139 = vxor.u32 %v136, 2147483648
    %v140 = vmul.f32 %v139, 1.442695
    %v141 = vpow.pop %v140
    %v142 = vadd.f32 %v141, 1.0
    %v143 = vrcp.pop %v142
    %v144 = vmul.f32 %v142, %v143
    %v145 = vsub.f32 1.0, %v144
    %v146 = vmul.f32 %v143, %v145
    %v147 = vadd.f32 %v143, %v146
    %vm148 = vweird.f32 %v142
    %vm149 = vweird.f32 %v143
    %vm150 = vmor %vm148, %vm149
    %v151 = vsel %vm150, %v143, %v147
    %v152 = vand.u32 2147483647, %v142
    %vm153 = vcmp.eq.f32.partialorder %v152, 8.507059e+37
    %v154 = vand.u32 %v142, 2147483648
    %v155 = vor.u32 1.1754944e-38, %v154
    %v156 = vsel %vm153, %v155, %v151
    %v157 = vmul.f32 1.0, %v156
    %v158 = vpack.c.bf16 %v157, %v157
    %s159 = scalar_lea.vmem [#allocation2], 32
    %v160 = vld [vmem:[%s159] sm:$0xf]
    %v161 = vld [vmem:[%s159 + $0x4] sm:$0xf]
    %v162 = vld [vmem:[%s159 + $0x8] sm:$0xf]
    %v163 = vld [vmem:[%s159 + $0xc] sm:$0xf]
    %s164 = scalar_lea.vmem [#allocation4], 16
    %v165 = vld [vmem:[%s164] sm:$0xff]
    %v170 = vunpack.c.l.b16 %v160
    %v171 = vunpack.c.l.b16 %v161
    %v172 = vunpack.c.l.b16 %v162
    %v173 = vunpack.c.l.b16 %v163
    %v174 = vpack.c.b16 %v171, %v170
    %v175 = vpack.c.b16 %v173, %v172
    %v179 = vsel %vm67, %v158, 0
    %181 = vmatpush.bf16.msra.mxu0 0
    %182 = vmatpush.bf16.msra.mxu0 0
    %183 = vmatpush.bf16.msra.mxu0 0
    %184 = vmatpush.bf16.msra.mxu0 0
    %185 = vmatpush.bf16.msra.mxu0 0
    %186 = vmatpush.bf16.msra.mxu0 0
    %187 = vmatpush.bf16.msra.mxu0 %v175
    %188 = vmatpush.bf16.msra.mxu0 %v174
    %189 = vmatmul.bf16.gmra.mxu0 %v179
    %v190 = vpop.f32.mrf.mxu0
    %v191 = vadd.f32 %v165, %v190
    %v192 = vpop.f32.mrf.mxu0
    %193 = vdwg.mxu0
    %v194 = vxor.u32 %v191, 2147483648
    %v195 = vmul.f32 %v194, 1.442695
    %v196 = vpow.pop %v195
    %v197 = vadd.f32 %v196, 1.0
    %v198 = vrcp.pop %v197
    %v199 = vmul.f32 %v197, %v198
    %v200 = vsub.f32 1.0, %v199
    %v201 = vmul.f32 %v198, %v200
    %v202 = vadd.f32 %v198, %v201
    %vm203 = vweird.f32 %v197
    %vm204 = vweird.f32 %v198
    %vm205 = vmor %vm203, %vm204
    %v206 = vsel %vm205, %v198, %v202
    %v207 = vand.u32 2147483647, %v197
    %vm208 = vcmp.eq.f32.partialorder %v207, 8.507059e+37
    %v209 = vand.u32 %v197, 2147483648
    %v210 = vor.u32 1.1754944e-38, %v209
    %v211 = vsel %vm208, %v210, %v206
    %v212 = vmul.f32 1.0, %v211
    %v213 = vpack.c.bf16 %v212, %v212
    %s214 = scalar_lea.vmem [#allocation2], 48
    %v215 = vld [vmem:[%s214] sm:$0xf]
    %v216 = vld [vmem:[%s214 + $0x4] sm:$0xf]
    %v217 = vld [vmem:[%s214 + $0x8] sm:$0xf]
    %v218 = vld [vmem:[%s214 + $0xc] sm:$0xf]
    %s219 = scalar_lea.vmem [#allocation4], 24
    %v220 = vld [vmem:[%s219] sm:$0xff]
    %v225 = vunpack.c.l.b16 %v215
    %v226 = vunpack.c.l.b16 %v216
    %v227 = vunpack.c.l.b16 %v217
    %v228 = vunpack.c.l.b16 %v218
    %v229 = vpack.c.b16 %v226, %v225
    %v230 = vpack.c.b16 %v228, %v227
    %v234 = vsel %vm67, %v213, 0
    %236 = vmatpush.bf16.msra.mxu0 0
    %237 = vmatpush.bf16.msra.mxu0 0
    %238 = vmatpush.bf16.msra.mxu0 0
    %239 = vmatpush.bf16.msra.mxu0 0
    %240 = vmatpush.bf16.msra.mxu0 0
    %241 = vmatpush.bf16.msra.mxu0 0
    %242 = vmatpush.bf16.msra.mxu0 %v230
    %243 = vmatpush.bf16.msra.mxu0 %v229
    %244 = vmatmul.bf16.gmra.mxu0 %v234
    %v245 = vpop.f32.mrf.mxu0
    %v246 = vadd.f32 %v220, %v245
    %v247 = vpop.f32.mrf.mxu0
    %248 = vdwg.mxu0
    %vm249 = vcmask 31744
    %v250 = vsel %vm249, %v246, -inf
    %251 = vmax.xlane.f32.xlu0 %v250
    %v252 = vpop.xlane.xlu0 %251
    %v253 = vsub.f32 %v246, %v252
    %v254 = vmul.f32 %v253, 1.442695
    %v255 = vpow.pop %v254
    %v256 = vsel %vm249, %v255, 0.0
    %257 = vadd.xlane.f32.xlu0 %v256
    %v258 = vpop.xlane.xlu0 %257
    %v259 = vrcp.pop %v258
    %v260 = vmul.f32 %v258, %v259
    %v261 = vsub.f32 1.0, %v260
    %v262 = vmul.f32 %v259, %v261
    %v263 = vadd.f32 %v259, %v262
    %vm264 = vweird.f32 %v258
    %vm265 = vweird.f32 %v259
    %vm266 = vmor %vm264, %vm265
    %v267 = vsel %vm266, %v259, %v263
    %v268 = vand.u32 2147483647, %v258
    %vm269 = vcmp.eq.f32.partialorder %v268, 8.507059e+37
    %v270 = vand.u32 %v258, 2147483648
    %v271 = vor.u32 1.1754944e-38, %v270
    %v272 = vsel %vm269, %v271, %v267
    %v273 = vmul.f32 %v255, %v272
    %274 = vst.msk [vmem:[%s3] sm:$0xff] %vm249, %v246
    %275 = vst.msk [vmem:[%s4] sm:$0xff] %vm249, %v273
    // Predicated region
    $region22: #{income_classifier_forward.1} parent=1 // pred_check
      _
    $region23: #{income_classifier_forward.1} parent=1 // pred_check_branch
      %277 = sbr.rel (0) target = $region25
    $region24: #{income_classifier_forward.1} parent=1 // pred_region
      _
    $region25: #{income_classifier_forward.1} parent=1 // pred_fallthru
      _
    // Predicated region
    $region26: #{income_classifier_forward.1} parent=1 // pred_check
      _
    $region27: #{income_classifier_forward.1} parent=1 // pred_check_branch
      %279 = sbr.rel (0) target = $region29
    $region28: #{income_classifier_forward.1} parent=1 // pred_region
      _
    $region29: #{income_classifier_forward.1} parent=1 // pred_fallthru
      _
    // Predicated region
    $region30: #{income_classifier_forward.1} parent=1 // pred_check
      _
    $region31: #{income_classifier_forward.1} parent=1 // pred_check_branch
      %281 = sbr.rel (0) target = $region33
    $region32: #{income_classifier_forward.1} parent=1 // pred_region
      _
    $region33: #{income_classifier_forward.1} parent=1 // pred_fallthru
      _
    // Predicated region
    $region34: #{income_classifier_forward.1} parent=1 // pred_check
      _
    $region35: #{income_classifier_forward.1} parent=1 // pred_check_branch
      %283 = sbr.rel (0) target = $region37
    $region36: #{income_classifier_forward.1} parent=1 // pred_region
      _
    $region37: #{income_classifier_forward.1} parent=1 // pred_fallthru
      _
    %284 = vsyncpa [#allocation3], 1
    %285 = vsyncpa [#allocation5], 1

</llo_original>
